<compile_context>
chip_gen: v7x
topology: tpu7x:2x2x1
jax: 0.10.0
libtpu: 0.0.40
codegen_flags: <defaults>
</compile_context>

<pallas_src>
import jax
import jax.numpy as jnp
from jax.experimental import pallas as pl
from jax.experimental.pallas import tpu as pltpu


_LANE = 128                      # lane width: keep DMA slices lane-dense
_DEFAULT_XLA_COPY_THRESHOLD = 1 << 20   # below 1 MiB, skip the Pallas launch
_DEFAULT_MAX_CHUNKS = 8          # outstanding DMA descriptors (total)
_DEFAULT_MIN_CHUNK_BYTES = 1 << 20      # don't split below ~1 MiB per chunk


def _split_rows(rows: int, n_chunks: int):
    """Evenly split `rows` into `n_chunks` contiguous (start, size) spans."""
    base, rem = divmod(rows, n_chunks)
    spans, start = [], 0
    for i in range(n_chunks):
        sz = base + (1 if i < rem else 0)
        if sz > 0:
            spans.append((start, sz))
        start += sz
    return spans


def _make_copy_kernel(core_chunks):
    """Build a kernel that DMA-copies its core's statically-assigned chunks.

    core_chunks: list (one entry per grid program / core) of lists of
    (row_start, row_count) spans.  All spans are static Python ints.
    """

    def kernel(x_ref, o_ref, sem):
        core = pl.program_id(0)

        def issue(chunks):
            # Start all chunk DMAs back-to-back (deep DMA queue occupancy),
            # then wait them all.
            copies = []
            for i, (r0, nr) in enumerate(chunks):
                cp = pltpu.make_async_copy(
                    x_ref.at[pl.ds(r0, nr), :],
                    o_ref.at[pl.ds(r0, nr), :],
                    sem.at[i],
                )
                cp.start()
                copies.append(cp)
            for cp in copies:
                cp.wait()

        for c, chunks in enumerate(core_chunks):
            if not chunks:
                continue

            @pl.when(core == c)
            def _(chunks=chunks):
                issue(chunks)

    return kernel


def _pallas_materialize_copy(x: jax.Array,
                             max_chunks: int = _DEFAULT_MAX_CHUNKS,
                             min_chunk_bytes: int = _DEFAULT_MIN_CHUNK_BYTES,
                             ) -> jax.Array:
    """Physically copy `x` into a fresh HBM buffer via chunked HBM->HBM DMAs."""
    total = int(x.size)
    itemsize = jnp.dtype(x.dtype).itemsize
    total_bytes = total * itemsize
    if total == 0:
        return x

    # Lane-dense 2-D view of the flat data; chunk along rows.  If the flat
    # size isn't a multiple of 128 lanes, fall back to one whole-array DMA.
    if total % _LANE == 0:
        rows = total // _LANE
        x2 = x.reshape(rows, _LANE)
    else:
        rows = 1
        x2 = x.reshape(1, total)

    n_chunks = max(1, min(max_chunks, rows,
                          total_bytes // max(1, min_chunk_bytes)))
    spans = _split_rows(rows, int(n_chunks))

    # Static split of the chunk list across (up to) two TensorCores (v7x);
    # on single-TC chips the "parallel" grid axis just runs sequentially.
    half = (len(spans) + 1) // 2
    core_chunks = [spans[:half], spans[half:]]
    core_chunks = [c for c in core_chunks if c]
    n_grid = len(core_chunks)
    max_per_core = max(len(c) for c in core_chunks)

    kernel = _make_copy_kernel(core_chunks)

    out2 = pl.pallas_call(
        kernel,
        out_shape=jax.ShapeDtypeStruct(x2.shape, x2.dtype),
        grid=(n_grid,),
        in_specs=[pl.BlockSpec(memory_space=pl.ANY)],    # raw HBM ref
        out_specs=pl.BlockSpec(memory_space=pl.ANY),     # raw HBM ref
        scratch_shapes=[pltpu.SemaphoreType.DMA((max_per_core,))],
        compiler_params=pltpu.CompilerParams(
            dimension_semantics=("parallel",)),
        cost_estimate=pl.CostEstimate(
            flops=0, transcendentals=0,
            bytes_accessed=2 * total_bytes),
    )(x2)

    return out2.reshape(x.shape)


class Reshape:
    """JAX/Pallas equivalent of the PyTorch Reshape module.

    forward(x) = x.reshape(-1, *shape).  The default path is metadata-only
    (zero bytes moved, no kernel launched).  With force_copy=True the result
    is materialized into a fresh buffer: small tensors via a plain XLA copy,
    large tensors via the chunked HBM->HBM DMA Pallas kernel above.
    """

    def __init__(self, shape, force_copy: bool = False, *,
                 xla_copy_threshold_bytes: int = _DEFAULT_XLA_COPY_THRESHOLD,
                 max_dma_chunks: int = _DEFAULT_MAX_CHUNKS,
                 min_dma_chunk_bytes: int = _DEFAULT_MIN_CHUNK_BYTES):
        self.shape = tuple(int(s) for s in shape)
        self.force_copy = bool(force_copy)
        self.xla_copy_threshold_bytes = int(xla_copy_threshold_bytes)
        self.max_dma_chunks = int(max_dma_chunks)
        self.min_dma_chunk_bytes = int(min_dma_chunk_bytes)

    def __call__(self, x: jax.Array) -> jax.Array:
        inner = 1
        for s in self.shape:
            inner *= s
        # Note: like the original, zero-sized target shapes are rejected at
        # trace time; torch permits some of them, but -1 inference with a
        # zero inner size is ill-defined anyway.
        assert inner > 0 and x.size % inner == 0, \
            "input size not divisible by target shape"

        if self.force_copy and x.size > 0:
            nbytes = int(x.size) * jnp.dtype(x.dtype).itemsize
            if nbytes < self.xla_copy_threshold_bytes:
                # Small tensor: pallas_call dispatch overhead would dominate.
                x = jnp.copy(x)
            else:
                x = _pallas_materialize_copy(
                    x,
                    max_chunks=self.max_dma_chunks,
                    min_chunk_bytes=self.min_dma_chunk_bytes,
                )

        # The (-1, *shape) semantics: metadata-only reshape.
        return x.reshape((-1,) + self.shape)


if __name__ == "__main__":
    key = jax.random.PRNGKey(0)
    # NCHW feature map: (batch=2, channels=4, H=16, W=16) -> 2048 f32 elems.
    x = jax.random.normal(key, (2, 4, 16, 16), dtype=jnp.float32)
    y_ref = x.reshape(-1, 4 * 16 * 16)

    # --- Default (fast) path: metadata-only, no kernel launch. -------------
    module = Reshape(shape=(4 * 16 * 16,))
    y = jax.block_until_ready(module(x))
    assert y.shape == (2, 1024), y.shape
    assert y.dtype == x.dtype
    assert bool(jnp.array_equal(y, y_ref))

    # --- Pallas path: force the chunked HBM->HBM DMA kernel on this small
    #     demo tensor by disabling the small-copy threshold and shrinking the
    #     minimum chunk size (exercises 8 outstanding DMAs on a 2-way grid).
    module_copy = Reshape(shape=(4 * 16 * 16,), force_copy=True,
                          xla_copy_threshold_bytes=0,
                          min_dma_chunk_bytes=256)
    y_c = jax.block_until_ready(module_copy(x))
    assert y_c.shape == (2, 1024), y_c.shape
    assert y_c.dtype == x.dtype
    assert bool(jnp.array_equal(y_c, y_ref))

    # --- Multi-dim target shape through the Pallas DMA path as well. -------
    module2 = Reshape(shape=(16, 16), force_copy=True,
                      xla_copy_threshold_bytes=0,
                      min_dma_chunk_bytes=256)
    y2 = jax.block_until_ready(module2(x))
    assert y2.shape == (8, 16, 16), y2.shape
    assert bool(jnp.array_equal(y2, x.reshape(-1, 16, 16)))

    # --- Small-copy path: default threshold routes force_copy through XLA. -
    module3 = Reshape(shape=(1024,), force_copy=True)
    y3 = jax.block_until_ready(module3(x))
    assert y3.shape == (2, 1024), y3.shape
    assert bool(jnp.array_equal(y3, y_ref))

    print("KERNEL_OK")
</pallas_src>

<mosaic_0001>
module attributes {stable_mosaic.version = 11 : i64} {
  func.func @kernel(%arg0: i32, %arg1: memref<16x128xf32, #tpu.memory_space<any>>, %arg2: memref<16x128xf32, #tpu.memory_space<any>>, %arg3: memref<4x!tpu.dma_semaphore, #tpu.memory_space<semaphore_mem>>) attributes {dimension_semantics = [#tpu.dimension_semantics<parallel>], iteration_bounds = array<i64: 2>, scalar_prefetch = 0 : i64, scratch_operands = 1 : i64, tpu.core_type = #tpu.core_type<tc>, window_params = [{}, {}]} {
    %c0_i32 = arith.constant 0 : i32
    %0 = arith.cmpi eq, %arg0, %c0_i32 : i32
    %1 = arith.extui %0 : i1 to i32
    %c0_i32_0 = arith.constant 0 : i32
    %2 = arith.cmpi ne, %1, %c0_i32_0 : i32
    scf.if %2 {
      %c0_i32_2 = arith.constant 0 : i32
      %c0_i32_3 = arith.constant 0 : i32
      %c0_i32_4 = arith.constant 0 : i32
      %6 = tpu.memref_slice %arg1[%c0_i32_3, %c0_i32_4] : memref<16x128xf32, #tpu.memory_space<any>> -> memref<2x128xf32, #tpu.memory_space<any>>
      %c0_i32_5 = arith.constant 0 : i32
      %c0_i32_6 = arith.constant 0 : i32
      %7 = tpu.memref_slice %arg2[%c0_i32_5, %c0_i32_6] : memref<16x128xf32, #tpu.memory_space<any>> -> memref<2x128xf32, #tpu.memory_space<any>>
      %8 = tpu.memref_slice %arg3[%c0_i32_2] : memref<4x!tpu.dma_semaphore, #tpu.memory_space<semaphore_mem>> -> memref<1x!tpu.dma_semaphore, #tpu.memory_space<semaphore_mem>>
      %9 = tpu.memref_squeeze %8 : memref<1x!tpu.dma_semaphore, #tpu.memory_space<semaphore_mem>> -> memref<!tpu.dma_semaphore, #tpu.memory_space<semaphore_mem>>
      tpu.enqueue_dma source(%6 : memref<2x128xf32, #tpu.memory_space<any>>) target(%7 : memref<2x128xf32, #tpu.memory_space<any>>) target_semaphore(%9 : memref<!tpu.dma_semaphore, #tpu.memory_space<semaphore_mem>>)
      %c1_i32_7 = arith.constant 1 : i32
      %c2_i32 = arith.constant 2 : i32
      %c0_i32_8 = arith.constant 0 : i32
      %10 = tpu.memref_slice %arg1[%c2_i32, %c0_i32_8] : memref<16x128xf32, #tpu.memory_space<any>> -> memref<2x128xf32, #tpu.memory_space<any>>
      %c2_i32_9 = arith.constant 2 : i32
      %c0_i32_10 = arith.constant 0 : i32
      %11 = tpu.memref_slice %arg2[%c2_i32_9, %c0_i32_10] : memref<16x128xf32, #tpu.memory_space<any>> -> memref<2x128xf32, #tpu.memory_space<any>>
      %12 = tpu.memref_slice %arg3[%c1_i32_7] : memref<4x!tpu.dma_semaphore, #tpu.memory_space<semaphore_mem>> -> memref<1x!tpu.dma_semaphore, #tpu.memory_space<semaphore_mem>>
      %13 = tpu.memref_squeeze %12 : memref<1x!tpu.dma_semaphore, #tpu.memory_space<semaphore_mem>> -> memref<!tpu.dma_semaphore, #tpu.memory_space<semaphore_mem>>
      tpu.enqueue_dma source(%10 : memref<2x128xf32, #tpu.memory_space<any>>) target(%11 : memref<2x128xf32, #tpu.memory_space<any>>) target_semaphore(%13 : memref<!tpu.dma_semaphore, #tpu.memory_space<semaphore_mem>>)
      %c2_i32_11 = arith.constant 2 : i32
      %c4_i32 = arith.constant 4 : i32
      %c0_i32_12 = arith.constant 0 : i32
      %14 = tpu.memref_slice %arg1[%c4_i32, %c0_i32_12] : memref<16x128xf32, #tpu.memory_space<any>> -> memref<2x128xf32, #tpu.memory_space<any>>
      %c4_i32_13 = arith.constant 4 : i32
      %c0_i32_14 = arith.constant 0 : i32
      %15 = tpu.memref_slice %arg2[%c4_i32_13, %c0_i32_14] : memref<16x128xf32, #tpu.memory_space<any>> -> memref<2x128xf32, #tpu.memory_space<any>>
      %16 = tpu.memref_slice %arg3[%c2_i32_11] : memref<4x!tpu.dma_semaphore, #tpu.memory_space<semaphore_mem>> -> memref<1x!tpu.dma_semaphore, #tpu.memory_space<semaphore_mem>>
      %17 = tpu.memref_squeeze %16 : memref<1x!tpu.dma_semaphore, #tpu.memory_space<semaphore_mem>> -> memref<!tpu.dma_semaphore, #tpu.memory_space<semaphore_mem>>
      tpu.enqueue_dma source(%14 : memref<2x128xf32, #tpu.memory_space<any>>) target(%15 : memref<2x128xf32, #tpu.memory_space<any>>) target_semaphore(%17 : memref<!tpu.dma_semaphore, #tpu.memory_space<semaphore_mem>>)
      %c3_i32 = arith.constant 3 : i32
      %c6_i32 = arith.constant 6 : i32
      %c0_i32_15 = arith.constant 0 : i32
      %18 = tpu.memref_slice %arg1[%c6_i32, %c0_i32_15] : memref<16x128xf32, #tpu.memory_space<any>> -> memref<2x128xf32, #tpu.memory_space<any>>
      %c6_i32_16 = arith.constant 6 : i32
      %c0_i32_17 = arith.constant 0 : i32
      %19 = tpu.memref_slice %arg2[%c6_i32_16, %c0_i32_17] : memref<16x128xf32, #tpu.memory_space<any>> -> memref<2x128xf32, #tpu.memory_space<any>>
      %20 = tpu.memref_slice %arg3[%c3_i32] : memref<4x!tpu.dma_semaphore, #tpu.memory_space<semaphore_mem>> -> memref<1x!tpu.dma_semaphore, #tpu.memory_space<semaphore_mem>>
      %21 = tpu.memref_squeeze %20 : memref<1x!tpu.dma_semaphore, #tpu.memory_space<semaphore_mem>> -> memref<!tpu.dma_semaphore, #tpu.memory_space<semaphore_mem>>
      tpu.enqueue_dma source(%18 : memref<2x128xf32, #tpu.memory_space<any>>) target(%19 : memref<2x128xf32, #tpu.memory_space<any>>) target_semaphore(%21 : memref<!tpu.dma_semaphore, #tpu.memory_space<semaphore_mem>>)
      %c0_i32_18 = arith.constant 0 : i32
      %c0_i32_19 = arith.constant 0 : i32
      %c0_i32_20 = arith.constant 0 : i32
      %22 = tpu.memref_slice %arg1[%c0_i32_19, %c0_i32_20] : memref<16x128xf32, #tpu.memory_space<any>> -> memref<2x128xf32, #tpu.memory_space<any>>
      %c0_i32_21 = arith.constant 0 : i32
      %c0_i32_22 = arith.constant 0 : i32
      %23 = tpu.memref_slice %arg2[%c0_i32_21, %c0_i32_22] : memref<16x128xf32, #tpu.memory_space<any>> -> memref<2x128xf32, #tpu.memory_space<any>>
      %24 = tpu.memref_slice %arg3[%c0_i32_18] : memref<4x!tpu.dma_semaphore, #tpu.memory_space<semaphore_mem>> -> memref<1x!tpu.dma_semaphore, #tpu.memory_space<semaphore_mem>>
      %25 = tpu.memref_squeeze %24 : memref<1x!tpu.dma_semaphore, #tpu.memory_space<semaphore_mem>> -> memref<!tpu.dma_semaphore, #tpu.memory_space<semaphore_mem>>
      tpu.wait_dma2 semaphore(%25 : memref<!tpu.dma_semaphore, #tpu.memory_space<semaphore_mem>>) src(%22 : memref<2x128xf32, #tpu.memory_space<any>>) dst(%23 : memref<2x128xf32, #tpu.memory_space<any>>)
      %c1_i32_23 = arith.constant 1 : i32
      %c2_i32_24 = arith.constant 2 : i32
      %c0_i32_25 = arith.constant 0 : i32
      %26 = tpu.memref_slice %arg1[%c2_i32_24, %c0_i32_25] : memref<16x128xf32, #tpu.memory_space<any>> -> memref<2x128xf32, #tpu.memory_space<any>>
      %c2_i32_26 = arith.constant 2 : i32
      %c0_i32_27 = arith.constant 0 : i32
      %27 = tpu.memref_slice %arg2[%c2_i32_26, %c0_i32_27] : memref<16x128xf32, #tpu.memory_space<any>> -> memref<2x128xf32, #tpu.memory_space<any>>
      %28 = tpu.memref_slice %arg3[%c1_i32_23] : memref<4x!tpu.dma_semaphore, #tpu.memory_space<semaphore_mem>> -> memref<1x!tpu.dma_semaphore, #tpu.memory_space<semaphore_mem>>
      %29 = tpu.memref_squeeze %28 : memref<1x!tpu.dma_semaphore, #tpu.memory_space<semaphore_mem>> -> memref<!tpu.dma_semaphore, #tpu.memory_space<semaphore_mem>>
      tpu.wait_dma2 semaphore(%29 : memref<!tpu.dma_semaphore, #tpu.memory_space<semaphore_mem>>) src(%26 : memref<2x128xf32, #tpu.memory_space<any>>) dst(%27 : memref<2x128xf32, #tpu.memory_space<any>>)
      %c2_i32_28 = arith.constant 2 : i32
      %c4_i32_29 = arith.constant 4 : i32
      %c0_i32_30 = arith.constant 0 : i32
      %30 = tpu.memref_slice %arg1[%c4_i32_29, %c0_i32_30] : memref<16x128xf32, #tpu.memory_space<any>> -> memref<2x128xf32, #tpu.memory_space<any>>
      %c4_i32_31 = arith.constant 4 : i32
      %c0_i32_32 = arith.constant 0 : i32
      %31 = tpu.memref_slice %arg2[%c4_i32_31, %c0_i32_32] : memref<16x128xf32, #tpu.memory_space<any>> -> memref<2x128xf32, #tpu.memory_space<any>>
      %32 = tpu.memref_slice %arg3[%c2_i32_28] : memref<4x!tpu.dma_semaphore, #tpu.memory_space<semaphore_mem>> -> memref<1x!tpu.dma_semaphore, #tpu.memory_space<semaphore_mem>>
      %33 = tpu.memref_squeeze %32 : memref<1x!tpu.dma_semaphore, #tpu.memory_space<semaphore_mem>> -> memref<!tpu.dma_semaphore, #tpu.memory_space<semaphore_mem>>
      tpu.wait_dma2 semaphore(%33 : memref<!tpu.dma_semaphore, #tpu.memory_space<semaphore_mem>>) src(%30 : memref<2x128xf32, #tpu.memory_space<any>>) dst(%31 : memref<2x128xf32, #tpu.memory_space<any>>)
      %c3_i32_33 = arith.constant 3 : i32
      %c6_i32_34 = arith.constant 6 : i32
      %c0_i32_35 = arith.constant 0 : i32
      %34 = tpu.memref_slice %arg1[%c6_i32_34, %c0_i32_35] : memref<16x128xf32, #tpu.memory_space<any>> -> memref<2x128xf32, #tpu.memory_space<any>>
      %c6_i32_36 = arith.constant 6 : i32
      %c0_i32_37 = arith.constant 0 : i32
      %35 = tpu.memref_slice %arg2[%c6_i32_36, %c0_i32_37] : memref<16x128xf32, #tpu.memory_space<any>> -> memref<2x128xf32, #tpu.memory_space<any>>
      %36 = tpu.memref_slice %arg3[%c3_i32_33] : memref<4x!tpu.dma_semaphore, #tpu.memory_space<semaphore_mem>> -> memref<1x!tpu.dma_semaphore, #tpu.memory_space<semaphore_mem>>
      %37 = tpu.memref_squeeze %36 : memref<1x!tpu.dma_semaphore, #tpu.memory_space<semaphore_mem>> -> memref<!tpu.dma_semaphore, #tpu.memory_space<semaphore_mem>>
      tpu.wait_dma2 semaphore(%37 : memref<!tpu.dma_semaphore, #tpu.memory_space<semaphore_mem>>) src(%34 : memref<2x128xf32, #tpu.memory_space<any>>) dst(%35 : memref<2x128xf32, #tpu.memory_space<any>>)
    } else {
    }
    %c1_i32 = arith.constant 1 : i32
    %3 = arith.cmpi eq, %arg0, %c1_i32 : i32
    %4 = arith.extui %3 : i1 to i32
    %c0_i32_1 = arith.constant 0 : i32
    %5 = arith.cmpi ne, %4, %c0_i32_1 : i32
    scf.if %5 {
      %c0_i32_2 = arith.constant 0 : i32
      %c8_i32 = arith.constant 8 : i32
      %c0_i32_3 = arith.constant 0 : i32
      %6 = tpu.memref_slice %arg1[%c8_i32, %c0_i32_3] : memref<16x128xf32, #tpu.memory_space<any>> -> memref<2x128xf32, #tpu.memory_space<any>>
      %c8_i32_4 = arith.constant 8 : i32
      %c0_i32_5 = arith.constant 0 : i32
      %7 = tpu.memref_slice %arg2[%c8_i32_4, %c0_i32_5] : memref<16x128xf32, #tpu.memory_space<any>> -> memref<2x128xf32, #tpu.memory_space<any>>
      %8 = tpu.memref_slice %arg3[%c0_i32_2] : memref<4x!tpu.dma_semaphore, #tpu.memory_space<semaphore_mem>> -> memref<1x!tpu.dma_semaphore, #tpu.memory_space<semaphore_mem>>
      %9 = tpu.memref_squeeze %8 : memref<1x!tpu.dma_semaphore, #tpu.memory_space<semaphore_mem>> -> memref<!tpu.dma_semaphore, #tpu.memory_space<semaphore_mem>>
      tpu.enqueue_dma source(%6 : memref<2x128xf32, #tpu.memory_space<any>>) target(%7 : memref<2x128xf32, #tpu.memory_space<any>>) target_semaphore(%9 : memref<!tpu.dma_semaphore, #tpu.memory_space<semaphore_mem>>)
      %c1_i32_6 = arith.constant 1 : i32
      %c10_i32 = arith.constant 10 : i32
      %c0_i32_7 = arith.constant 0 : i32
      %10 = tpu.memref_slice %arg1[%c10_i32, %c0_i32_7] : memref<16x128xf32, #tpu.memory_space<any>> -> memref<2x128xf32, #tpu.memory_space<any>>
      %c10_i32_8 = arith.constant 10 : i32
      %c0_i32_9 = arith.constant 0 : i32
      %11 = tpu.memref_slice %arg2[%c10_i32_8, %c0_i32_9] : memref<16x128xf32, #tpu.memory_space<any>> -> memref<2x128xf32, #tpu.memory_space<any>>
      %12 = tpu.memref_slice %arg3[%c1_i32_6] : memref<4x!tpu.dma_semaphore, #tpu.memory_space<semaphore_mem>> -> memref<1x!tpu.dma_semaphore, #tpu.memory_space<semaphore_mem>>
      %13 = tpu.memref_squeeze %12 : memref<1x!tpu.dma_semaphore, #tpu.memory_space<semaphore_mem>> -> memref<!tpu.dma_semaphore, #tpu.memory_space<semaphore_mem>>
      tpu.enqueue_dma source(%10 : memref<2x128xf32, #tpu.memory_space<any>>) target(%11 : memref<2x128xf32, #tpu.memory_space<any>>) target_semaphore(%13 : memref<!tpu.dma_semaphore, #tpu.memory_space<semaphore_mem>>)
      %c2_i32 = arith.constant 2 : i32
      %c12_i32 = arith.constant 12 : i32
      %c0_i32_10 = arith.constant 0 : i32
      %14 = tpu.memref_slice %arg1[%c12_i32, %c0_i32_10] : memref<16x128xf32, #tpu.memory_space<any>> -> memref<2x128xf32, #tpu.memory_space<any>>
      %c12_i32_11 = arith.constant 12 : i32
      %c0_i32_12 = arith.constant 0 : i32
      %15 = tpu.memref_slice %arg2[%c12_i32_11, %c0_i32_12] : memref<16x128xf32, #tpu.memory_space<any>> -> memref<2x128xf32, #tpu.memory_space<any>>
      %16 = tpu.memref_slice %arg3[%c2_i32] : memref<4x!tpu.dma_semaphore, #tpu.memory_space<semaphore_mem>> -> memref<1x!tpu.dma_semaphore, #tpu.memory_space<semaphore_mem>>
      %17 = tpu.memref_squeeze %16 : memref<1x!tpu.dma_semaphore, #tpu.memory_space<semaphore_mem>> -> memref<!tpu.dma_semaphore, #tpu.memory_space<semaphore_mem>>
      tpu.enqueue_dma source(%14 : memref<2x128xf32, #tpu.memory_space<any>>) target(%15 : memref<2x128xf32, #tpu.memory_space<any>>) target_semaphore(%17 : memref<!tpu.dma_semaphore, #tpu.memory_space<semaphore_mem>>)
      %c3_i32 = arith.constant 3 : i32
      %c14_i32 = arith.constant 14 : i32
      %c0_i32_13 = arith.constant 0 : i32
      %18 = tpu.memref_slice %arg1[%c14_i32, %c0_i32_13] : memref<16x128xf32, #tpu.memory_space<any>> -> memref<2x128xf32, #tpu.memory_space<any>>
      %c14_i32_14 = arith.constant 14 : i32
      %c0_i32_15 = arith.constant 0 : i32
      %19 = tpu.memref_slice %arg2[%c14_i32_14, %c0_i32_15] : memref<16x128xf32, #tpu.memory_space<any>> -> memref<2x128xf32, #tpu.memory_space<any>>
      %20 = tpu.memref_slice %arg3[%c3_i32] : memref<4x!tpu.dma_semaphore, #tpu.memory_space<semaphore_mem>> -> memref<1x!tpu.dma_semaphore, #tpu.memory_space<semaphore_mem>>
      %21 = tpu.memref_squeeze %20 : memref<1x!tpu.dma_semaphore, #tpu.memory_space<semaphore_mem>> -> memref<!tpu.dma_semaphore, #tpu.memory_space<semaphore_mem>>
      tpu.enqueue_dma source(%18 : memref<2x128xf32, #tpu.memory_space<any>>) target(%19 : memref<2x128xf32, #tpu.memory_space<any>>) target_semaphore(%21 : memref<!tpu.dma_semaphore, #tpu.memory_space<semaphore_mem>>)
      %c0_i32_16 = arith.constant 0 : i32
      %c8_i32_17 = arith.constant 8 : i32
      %c0_i32_18 = arith.constant 0 : i32
      %22 = tpu.memref_slice %arg1[%c8_i32_17, %c0_i32_18] : memref<16x128xf32, #tpu.memory_space<any>> -> memref<2x128xf32, #tpu.memory_space<any>>
      %c8_i32_19 = arith.constant 8 : i32
      %c0_i32_20 = arith.constant 0 : i32
      %23 = tpu.memref_slice %arg2[%c8_i32_19, %c0_i32_20] : memref<16x128xf32, #tpu.memory_space<any>> -> memref<2x128xf32, #tpu.memory_space<any>>
      %24 = tpu.memref_slice %arg3[%c0_i32_16] : memref<4x!tpu.dma_semaphore, #tpu.memory_space<semaphore_mem>> -> memref<1x!tpu.dma_semaphore, #tpu.memory_space<semaphore_mem>>
      %25 = tpu.memref_squeeze %24 : memref<1x!tpu.dma_semaphore, #tpu.memory_space<semaphore_mem>> -> memref<!tpu.dma_semaphore, #tpu.memory_space<semaphore_mem>>
      tpu.wait_dma2 semaphore(%25 : memref<!tpu.dma_semaphore, #tpu.memory_space<semaphore_mem>>) src(%22 : memref<2x128xf32, #tpu.memory_space<any>>) dst(%23 : memref<2x128xf32, #tpu.memory_space<any>>)
      %c1_i32_21 = arith.constant 1 : i32
      %c10_i32_22 = arith.constant 10 : i32
      %c0_i32_23 = arith.constant 0 : i32
      %26 = tpu.memref_slice %arg1[%c10_i32_22, %c0_i32_23] : memref<16x128xf32, #tpu.memory_space<any>> -> memref<2x128xf32, #tpu.memory_space<any>>
      %c10_i32_24 = arith.constant 10 : i32
      %c0_i32_25 = arith.constant 0 : i32
      %27 = tpu.memref_slice %arg2[%c10_i32_24, %c0_i32_25] : memref<16x128xf32, #tpu.memory_space<any>> -> memref<2x128xf32, #tpu.memory_space<any>>
      %28 = tpu.memref_slice %arg3[%c1_i32_21] : memref<4x!tpu.dma_semaphore, #tpu.memory_space<semaphore_mem>> -> memref<1x!tpu.dma_semaphore, #tpu.memory_space<semaphore_mem>>
      %29 = tpu.memref_squeeze %28 : memref<1x!tpu.dma_semaphore, #tpu.memory_space<semaphore_mem>> -> memref<!tpu.dma_semaphore, #tpu.memory_space<semaphore_mem>>
      tpu.wait_dma2 semaphore(%29 : memref<!tpu.dma_semaphore, #tpu.memory_space<semaphore_mem>>) src(%26 : memref<2x128xf32, #tpu.memory_space<any>>) dst(%27 : memref<2x128xf32, #tpu.memory_space<any>>)
      %c2_i32_26 = arith.constant 2 : i32
      %c12_i32_27 = arith.constant 12 : i32
      %c0_i32_28 = arith.constant 0 : i32
      %30 = tpu.memref_slice %arg1[%c12_i32_27, %c0_i32_28] : memref<16x128xf32, #tpu.memory_space<any>> -> memref<2x128xf32, #tpu.memory_space<any>>
      %c12_i32_29 = arith.constant 12 : i32
      %c0_i32_30 = arith.constant 0 : i32
      %31 = tpu.memref_slice %arg2[%c12_i32_29, %c0_i32_30] : memref<16x128xf32, #tpu.memory_space<any>> -> memref<2x128xf32, #tpu.memory_space<any>>
      %32 = tpu.memref_slice %arg3[%c2_i32_26] : memref<4x!tpu.dma_semaphore, #tpu.memory_space<semaphore_mem>> -> memref<1x!tpu.dma_semaphore, #tpu.memory_space<semaphore_mem>>
      %33 = tpu.memref_squeeze %32 : memref<1x!tpu.dma_semaphore, #tpu.memory_space<semaphore_mem>> -> memref<!tpu.dma_semaphore, #tpu.memory_space<semaphore_mem>>
      tpu.wait_dma2 semaphore(%33 : memref<!tpu.dma_semaphore, #tpu.memory_space<semaphore_mem>>) src(%30 : memref<2x128xf32, #tpu.memory_space<any>>) dst(%31 : memref<2x128xf32, #tpu.memory_space<any>>)
      %c3_i32_31 = arith.constant 3 : i32
      %c14_i32_32 = arith.constant 14 : i32
      %c0_i32_33 = arith.constant 0 : i32
      %34 = tpu.memref_slice %arg1[%c14_i32_32, %c0_i32_33] : memref<16x128xf32, #tpu.memory_space<any>> -> memref<2x128xf32, #tpu.memory_space<any>>
      %c14_i32_34 = arith.constant 14 : i32
      %c0_i32_35 = arith.constant 0 : i32
      %35 = tpu.memref_slice %arg2[%c14_i32_34, %c0_i32_35] : memref<16x128xf32, #tpu.memory_space<any>> -> memref<2x128xf32, #tpu.memory_space<any>>
      %36 = tpu.memref_slice %arg3[%c3_i32_31] : memref<4x!tpu.dma_semaphore, #tpu.memory_space<semaphore_mem>> -> memref<1x!tpu.dma_semaphore, #tpu.memory_space<semaphore_mem>>
      %37 = tpu.memref_squeeze %36 : memref<1x!tpu.dma_semaphore, #tpu.memory_space<semaphore_mem>> -> memref<!tpu.dma_semaphore, #tpu.memory_space<semaphore_mem>>
      tpu.wait_dma2 semaphore(%37 : memref<!tpu.dma_semaphore, #tpu.memory_space<semaphore_mem>>) src(%34 : memref<2x128xf32, #tpu.memory_space<any>>) dst(%35 : memref<2x128xf32, #tpu.memory_space<any>>)
    } else {
    }
    return
  }
}

</mosaic_0001>

<llo_original>
// kernel: tpu_custom_call.1
$region0: #{tpu_custom_call.1}
  #allocation0 [shape = 'u32[]', space=smem, size = 0x4, offset = 0x4, fixed_abs, tag = 'smem constant byte address 0x4 - core index']
  #allocation1 [shape = 'u32[144,128]{1,0:T(1,128)}', space=vmem, size = 0x12000, scoped, tag = 'internal scratch']
  #allocation2 [shape = 's32[4]{0}', space=sflag, size = 0x10, scoped, tag = 'scratch operand']
  #allocation3 [shape = 's32[]', space=sflag, size = 0x4, offset = 0, fixed_abs, tag = 'sflag constant byte address 0x0 - dummy sync flag']
  #allocation4 [shape = 'u32[0]{0}', space=smem, size = 0, offset = 0, fixed_abs, tag = 'smem constant byte address 0x0 - null']
  #allocation5 [shape = 's32[]', space=sflag, size = 0x4, offset = 0, fixed_abs, tag = 'sflag constant byte address 0x0 - dummy sync flag']
  #allocation6 [shape = 'u32[0]{0}', space=smem, size = 0, offset = 0, fixed_abs, tag = 'smem constant byte address 0x0 - null']
  #allocation7 [shape = 's32[]', space=sflag, size = 0x4, offset = 0, fixed_abs, tag = 'sflag constant byte address 0x0 - dummy sync flag']
  #allocation8 [shape = 'u32[0]{0}', space=smem, size = 0, offset = 0, fixed_abs, tag = 'smem constant byte address 0x0 - null']
  #allocation9 [shape = 's32[]', space=sflag, size = 0x4, offset = 0, fixed_abs, tag = 'sflag constant byte address 0x0 - dummy sync flag']
  #allocation10 [shape = 'u32[0]{0}', space=smem, size = 0, offset = 0, fixed_abs, tag = 'smem constant byte address 0x0 - null']
  #allocation11 [shape = 's32[]', space=sflag, size = 0x4, offset = 0, fixed_abs, tag = 'sflag constant byte address 0x0 - dummy sync flag']
  #allocation12 [shape = 'u32[0]{0}', space=smem, size = 0, offset = 0, fixed_abs, tag = 'smem constant byte address 0x0 - null']
  #allocation13 [shape = 's32[]', space=sflag, size = 0x4, offset = 0, fixed_abs, tag = 'sflag constant byte address 0x0 - dummy sync flag']
  #allocation14 [shape = 'u32[0]{0}', space=smem, size = 0, offset = 0, fixed_abs, tag = 'smem constant byte address 0x0 - null']
  #allocation15 [shape = 's32[]', space=sflag, size = 0x4, offset = 0, fixed_abs, tag = 'sflag constant byte address 0x0 - dummy sync flag']
  #allocation16 [shape = 'u32[0]{0}', space=smem, size = 0, offset = 0, fixed_abs, tag = 'smem constant byte address 0x0 - null']
  #allocation17 [shape = 's32[]', space=sflag, size = 0x4, offset = 0, fixed_abs, tag = 'sflag constant byte address 0x0 - dummy sync flag']
  #allocation18 [shape = 'u32[0]{0}', space=smem, size = 0, offset = 0, fixed_abs, tag = 'smem constant byte address 0x0 - null']
  %s0 = inlined_call_operand.hbm [shape: f32[16,128], index: 0, kind: input, shape index: {}]
  %s1 = inlined_call_operand.hbm [shape: f32[16,128], index: 1, kind: output, shape index: {}]
  %s2 = sld [smem:[#allocation0]]
  $region17: #{tpu_custom_call.1} parent=0
    _
  %s4 = ssub.s32 1, %s2
  %s5 = scalar_select 0, %s4, %s2
  loop: start=0, step=1, limit=2
  $region2: #{tpu_custom_call.1} parent=0 // loop_pre_header
    _
  $region3: #{tpu_custom_call.1} parent=0 // loop_header
    %s7 = sphi 0, %s11
    %p8 = scmp.ge.s32.totalorder %s7, 2
  $region4: #{tpu_custom_call.1} parent=0 // loop_header_branch
    %10 = sbr.rel (%p8) target = $region8
  $region5: #{tpu_custom_call.1} parent=0 // loop_body
    %s12 = sadd.s32 %s7, 1
    %p13 = scmp.eq.s32.totalorder %s7, 0
    // Predicated region
    $region9: #{tpu_custom_call.1} parent=5 // pred_check
      %p14 = pneg %p13
    $region10: #{tpu_custom_call.1} parent=5 // pred_check_branch
      %16 = sbr.rel (%p14) target = $region12
    $region11: #{tpu_custom_call.1} parent=5 // pred_region
      %s18 = sshll.u32 1, 14
      %s19 = sxor.u32 4294967295, %s18
      %s22 = sshll.u32 3, 24
      %s23 = sxor.u32 4294967295, %s22
      %s24 = sand.u32 0, %s23
      %s26 = sor.u32 %s24, 0
      %29 = dma.general %s0, 32, %s1, [#allocation2], [#allocation3], [#allocation4], %s26, 0
      %s30 = scalar_lea.hbm %s0, 32
      %s31 = scalar_lea.hbm %s1, 32
      %s32 = scalar_lea.sflag [#allocation2], 1
      %s34 = sshll.u32 1, 14
      %s35 = sxor.u32 4294967295, %s34
      %s38 = sshll.u32 3, 24
      %s39 = sxor.u32 4294967295, %s38
      %s40 = sand.u32 0, %s39
      %s42 = sor.u32 %s40, 0
      %45 = dma.general %s30, 32, %s31, %s32, [#allocation5], [#allocation6], %s42, 0
      %s46 = scalar_lea.hbm %s0, 64
      %s47 = scalar_lea.hbm %s1, 64
      %s48 = scalar_lea.sflag [#allocation2], 2
      %s50 = sshll.u32 1, 14
      %s51 = sxor.u32 4294967295, %s50
      %s54 = sshll.u32 3, 24
      %s55 = sxor.u32 4294967295, %s54
      %s56 = sand.u32 0, %s55
      %s58 = sor.u32 %s56, 0
      %61 = dma.general %s46, 32, %s47, %s48, [#allocation7], [#allocation8], %s58, 0
      %s62 = scalar_lea.hbm %s0, 96
      %s63 = scalar_lea.hbm %s1, 96
      %s64 = scalar_lea.sflag [#allocation2], 3
      %s66 = sshll.u32 1, 14
      %s67 = sxor.u32 4294967295, %s66
      %s70 = sshll.u32 3, 24
      %s71 = sxor.u32 4294967295, %s70
      %s72 = sand.u32 0, %s71
      %s74 = sor.u32 %s72, 0
      %77 = dma.general %s62, 32, %s63, %s64, [#allocation9], [#allocation10], %s74, 0
      %s78 = smul.u32 2, 1
      %s79 = sshll.u32 %s78, 4
      %80 = dma.done [#allocation2], %s79
      %s81 = sshll.u32 %s78, 4
      %82 = dma.done %s32, %s81
      %s83 = sshll.u32 %s78, 4
      %84 = dma.done %s48, %s83
      %s85 = sshll.u32 %s78, 4
      %86 = dma.done %s64, %s85
    $region12: #{tpu_custom_call.1} parent=5 // pred_fallthru
      _
    %p87 = scmp.eq.s32.totalorder %s7, 1
    // Predicated region
    $region13: #{tpu_custom_call.1} parent=5 // pred_check
      %p88 = pneg %p87
    $region14: #{tpu_custom_call.1} parent=5 // pred_check_branch
      %90 = sbr.rel (%p88) target = $region16
    $region15: #{tpu_custom_call.1} parent=5 // pred_region
      %s91 = scalar_lea.hbm %s0, 128
      %s92 = scalar_lea.hbm %s1, 128
      %s94 = sshll.u32 1, 14
      %s95 = sxor.u32 4294967295, %s94
      %s98 = sshll.u32 3, 24
      %s99 = sxor.u32 4294967295, %s98
      %s100 = sand.u32 0, %s99
      %s102 = sor.u32 %s100, 0
      %105 = dma.general %s91, 32, %s92, [#allocation2], [#allocation11], [#allocation12], %s102, 0
      %s106 = scalar_lea.hbm %s0, 160
      %s107 = scalar_lea.hbm %s1, 160
      %s108 = scalar_lea.sflag [#allocation2], 1
      %s110 = sshll.u32 1, 14
      %s111 = sxor.u32 4294967295, %s110
      %s114 = sshll.u32 3, 24
      %s115 = sxor.u32 4294967295, %s114
      %s116 = sand.u32 0, %s115
      %s118 = sor.u32 %s116, 0
      %121 = dma.general %s106, 32, %s107, %s108, [#allocation13], [#allocation14], %s118, 0
      %s122 = scalar_lea.hbm %s0, 192
      %s123 = scalar_lea.hbm %s1, 192
      %s124 = scalar_lea.sflag [#allocation2], 2
      %s126 = sshll.u32 1, 14
      %s127 = sxor.u32 4294967295, %s126
      %s130 = sshll.u32 3, 24
      %s131 = sxor.u32 4294967295, %s130
      %s132 = sand.u32 0, %s131
      %s134 = sor.u32 %s132, 0
      %137 = dma.general %s122, 32, %s123, %s124, [#allocation15], [#allocation16], %s134, 0
      %s138 = scalar_lea.hbm %s0, 224
      %s139 = scalar_lea.hbm %s1, 224
      %s140 = scalar_lea.sflag [#allocation2], 3
      %s142 = sshll.u32 1, 14
      %s143 = sxor.u32 4294967295, %s142
      %s146 = sshll.u32 3, 24
      %s147 = sxor.u32 4294967295, %s146
      %s148 = sand.u32 0, %s147
      %s150 = sor.u32 %s148, 0
      %153 = dma.general %s138, 32, %s139, %s140, [#allocation17], [#allocation18], %s150, 0
      %s154 = smul.u32 2, 1
      %s155 = sshll.u32 %s154, 4
      %156 = dma.done [#allocation2], %s155
      %s157 = sshll.u32 %s154, 4
      %158 = dma.done %s108, %s157
      %s159 = sshll.u32 %s154, 4
      %160 = dma.done %s124, %s159
      %s161 = sshll.u32 %s154, 4
      %162 = dma.done %s140, %s161
    $region16: #{tpu_custom_call.1} parent=5 // pred_fallthru
      _
  $region6: #{tpu_custom_call.1} parent=0 // loop_footer
    %s11 = sadd.s32 1, %s7
  $region7: #{tpu_custom_call.1} parent=0 // loop_footer_branch
    %6 = sbr.rel target = $region3
  $region8: #{tpu_custom_call.1} parent=0 // loop_exit
    _
  %163 = vsyncmov [#allocation2]
  %s164 = vpop.sfrf %163
  %p165 = scmp.eq.s32.totalorder %s164, 0
  %p166 = pneg %p165
  %168 = shalt.err (%p166)
  %s169 = scalar_lea.sflag [#allocation2], 1
  %170 = vsyncmov %s169
  %s171 = vpop.sfrf %170
  %p172 = scmp.eq.s32.totalorder %s171, 0
  %p173 = pneg %p172
  %175 = shalt.err (%p173)
  %s176 = scalar_lea.sflag [#allocation2], 2
  %177 = vsyncmov %s176
  %s178 = vpop.sfrf %177
  %p179 = scmp.eq.s32.totalorder %s178, 0
  %p180 = pneg %p179
  %182 = shalt.err (%p180)
  %s183 = scalar_lea.sflag [#allocation2], 3
  %184 = vsyncmov %s183
  %s185 = vpop.sfrf %184
  %p186 = scmp.eq.s32.totalorder %s185, 0
  %p187 = pneg %p186
  %189 = shalt.err (%p187)

</llo_original>
